<compile_context>
chip_gen: v7x
topology: tpu7x:2x2x1
jax: 0.10.0
libtpu: 0.0.40
codegen_flags: <defaults>
</compile_context>

<pallas_src>
import functools
import math

import numpy as np
import jax
import jax.numpy as jnp
from jax.experimental import pallas as pl
from jax.experimental.pallas import tpu as pltpu


EPS = 1e-8
SLOPE = 0.2            # LeakyReLU(0.2)
RGB_LANE_PAD = 128     # lane-dense width of the packed to-RGB output


# ----------------------------------------------------------------------------
# Fused kernel: everything is a chain of lane-dense (B, 256)-ish MXU dots.
# ----------------------------------------------------------------------------
def _leaky(x):
    # vmul + vmax (cheaper than vcmp + vsel) — valid for slope in (0, 1).
    return jnp.maximum(x, SLOPE * x)


def _group_pixelnorm(h, g):
    """Per-pixel channel pixelnorm, lane-dense via block-diag averaging matrix."""
    msq = jnp.dot(h * h, g, preferred_element_type=jnp.float32)
    return h * jax.lax.rsqrt(msq + EPS)


def _generator_kernel(xc_ref, fw_ref, fb_ref, g_ref, t_ref, cb_ref,
                      rw_ref, rb_ref, out_ref, *, latent_dim):
    # ---- 1) latent pixelnorm (only the first `latent_dim` lanes), fused fmt dot
    xc = xc_ref[...].astype(jnp.float32)                      # (B, latent+classes)
    col = jax.lax.broadcasted_iota(jnp.int32, xc.shape, 1)
    is_lat = col < latent_dim
    sq = jnp.where(is_lat, xc * xc, 0.0)
    ms = jnp.sum(sq, axis=-1, keepdims=True) * (1.0 / latent_dim)
    lhs = jnp.where(is_lat, xc * jax.lax.rsqrt(ms + EPS), xc)

    h = jnp.dot(lhs, fw_ref[...], preferred_element_type=jnp.float32) + fb_ref[...]
    h = _leaky(h)                                             # (B, H*W*C), (h,w,c) cols
    h = _group_pixelnorm(h, g_ref[...])

    # ---- 2) 3x3 pad-1 conv as a single Toeplitz dot, then leaky + pixelnorm ----
    y = jnp.dot(h, t_ref[...], preferred_element_type=jnp.float32) + cb_ref[...]
    y = _leaky(y)
    y = _group_pixelnorm(y, g_ref[...])

    # ---- 3) to-RGB 1x1 conv folded to (H*W*C, 128); unmasked lane-dense store --
    out = jnp.dot(y, rw_ref[...], preferred_element_type=jnp.float32) + rb_ref[...]
    out_ref[...] = out.astype(out_ref.dtype)


# ----------------------------------------------------------------------------
# Parameters (mirrors ConstrainedLayer init: W ~ N(0,1), b = 0, scale = sqrt(2/fan_in))
# ----------------------------------------------------------------------------
def init_generator_params(key, latent_dim, out_channels, init_channels, num_classes):
    k1, k2, k3 = jax.random.split(key, 3)
    fan_in_fmt = latent_dim + num_classes
    params = {
        "fmt_w": jax.random.normal(k1, (4 * 4 * init_channels, fan_in_fmt), jnp.float32),
        "fmt_b": jnp.zeros((4 * 4 * init_channels,), jnp.float32),
        "conv3_w": jax.random.normal(k2, (init_channels, init_channels, 3, 3), jnp.float32),
        "conv3_b": jnp.zeros((init_channels,), jnp.float32),
        "rgb_w": jax.random.normal(k3, (out_channels, init_channels, 1, 1), jnp.float32),
        "rgb_b": jnp.zeros((out_channels,), jnp.float32),
    }
    # Equalized-lr scales as *Python floats* (static; folded at prep, never traced).
    scales = {
        "fmt_scale": math.sqrt(2.0 / fan_in_fmt),
        "conv3_scale": math.sqrt(2.0 / (init_channels * 3 * 3)),
        "rgb_scale": math.sqrt(2.0 / init_channels),
    }
    return params, scales


def prepare_generator_params(params, scales, latent_dim, out_channels, init_channels):
    """One-time host-side layout prep:
       * permute fmt-layer output columns to (h, w, c) order, fold lr scale,
       * build the block-diag pixelnorm averaging matrix G,
       * build the 3x3 pad-1 conv Toeplitz matrix T (zero pad baked in),
       * pack the to-RGB 1x1 conv into a lane-padded (H*W*C, 128) matrix."""
    C, H, W = init_channels, 4, 4
    HWC = H * W * C

    # --- format layer: torch Linear weight (out=C*H*W, in); outputs consumed as
    # .view(B, C, 4, 4) i.e. (c, h, w) order -> permute rows to (h, w, c).
    w = np.asarray(params["fmt_w"], np.float32)
    w = w.reshape(C, H, W, -1).transpose(1, 2, 0, 3).reshape(HWC, -1)
    fmt_w = np.ascontiguousarray((w * scales["fmt_scale"]).T)            # (fan_in, HWC)
    fmt_b = (np.asarray(params["fmt_b"], np.float32).reshape(C, H, W)
             .transpose(1, 2, 0).reshape(1, HWC) * scales["fmt_scale"])

    # --- per-pixel channel-mean matrix: G[(p,c1),(p,c2)] = 1/C.
    G = np.kron(np.eye(H * W, dtype=np.float32),
                np.full((C, C), 1.0 / C, np.float32))                    # (HWC, HWC)

    # --- 3x3 pad-1 conv as Toeplitz: out[(ho,wo,co)] += in[(hi,wi,ci)] * w[co,ci,ky,kx].
    wconv = np.asarray(params["conv3_w"], np.float32) * scales["conv3_scale"]
    T = np.zeros((HWC, HWC), np.float32)
    for ho in range(H):
        for wo in range(W):
            for ky in range(3):
                for kx in range(3):
                    hi, wi = ho + ky - 1, wo + kx - 1
                    if 0 <= hi < H and 0 <= wi < W:
                        rin = (hi * W + wi) * C
                        cout = (ho * W + wo) * C
                        T[rin:rin + C, cout:cout + C] = wconv[:, :, ky, kx].T
    conv_b = np.tile(np.asarray(params["conv3_b"], np.float32)
                     * scales["conv3_scale"], H * W).reshape(1, HWC)

    # --- to-RGB 1x1: pack (pixel, rgb) pairs into the first H*W*out_channels of
    # 128 output lanes so the final store is unmasked / lane-dense.
    assert H * W * out_channels <= RGB_LANE_PAD, "packed RGB layout needs <=128 lanes"
    wrgb = (np.asarray(params["rgb_w"], np.float32).reshape(out_channels, C)
            * scales["rgb_scale"])
    R = np.zeros((HWC, RGB_LANE_PAD), np.float32)
    for p in range(H * W):
        R[p * C:(p + 1) * C, p * out_channels:(p + 1) * out_channels] = wrgb.T
    rb = np.zeros((1, RGB_LANE_PAD), np.float32)
    rb[0, :H * W * out_channels] = np.tile(
        np.asarray(params["rgb_b"], np.float32) * scales["rgb_scale"], H * W)

    return {"fmt_w": jnp.asarray(fmt_w), "fmt_b": jnp.asarray(fmt_b),
            "G": jnp.asarray(G), "T": jnp.asarray(T),
            "conv_b": jnp.asarray(conv_b),
            "rgb_w": jnp.asarray(R), "rgb_b": jnp.asarray(rb)}


# ----------------------------------------------------------------------------
# Forward (single fused pallas_call, no grid, whole arrays VMEM-resident)
# ----------------------------------------------------------------------------
def generator_forward(prep, x, labels, *, latent_dim, out_channels, init_channels):
    B = x.shape[0]
    C, H, W = init_channels, 4, 4
    xc = jnp.concatenate([x, labels], axis=1)          # layout plumbing only
    kern = functools.partial(_generator_kernel, latent_dim=latent_dim)

    vmem = pl.BlockSpec(memory_space=pltpu.MemorySpace.VMEM)
    out_pad = pl.pallas_call(
        kern,
        out_shape=jax.ShapeDtypeStruct((B, RGB_LANE_PAD), jnp.float32),
        in_specs=[vmem] * 8,
        out_specs=vmem,
    )(xc, prep["fmt_w"], prep["fmt_b"], prep["G"], prep["T"],
      prep["conv_b"], prep["rgb_w"], prep["rgb_b"])

    # Trailing layout plumbing only: drop lane padding, (h,w,rgb) cols -> NCHW.
    out = out_pad[:, :H * W * out_channels]
    return out.reshape(B, H, W, out_channels).transpose(0, 3, 1, 2)

    # TODO(synk): progressive-growing branches (scale_layers / upscale_2d /
    # alpha blending / generation_activation) are inactive on a freshly
    # constructed module (alpha=0, no added layers), so they are not emitted.


# ----------------------------------------------------------------------------
# Pure-JAX reference (mirrors the PyTorch forward) for a sanity check
# ----------------------------------------------------------------------------
def _reference_forward(params, scales, x, labels, init_channels, out_channels):
    B, C = x.shape[0], init_channels
    xn = x * jax.lax.rsqrt(jnp.mean(x * x, axis=1, keepdims=True) + EPS)
    xc = jnp.concatenate([xn, labels], axis=1)
    h = (xc @ params["fmt_w"].T + params["fmt_b"]) * scales["fmt_scale"]
    h = jnp.where(h >= 0, h, SLOPE * h)
    h = h.reshape(B, C, 4, 4)
    h = h * jax.lax.rsqrt(jnp.mean(h * h, axis=1, keepdims=True) + EPS)
    y = jax.lax.conv_general_dilated(
        h, params["conv3_w"], (1, 1), ((1, 1), (1, 1)),
        dimension_numbers=("NCHW", "OIHW", "NCHW"))
    y = (y + params["conv3_b"].reshape(1, C, 1, 1)) * scales["conv3_scale"]
    y = jnp.where(y >= 0, y, SLOPE * y)
    y = y * jax.lax.rsqrt(jnp.mean(y * y, axis=1, keepdims=True) + EPS)
    r = jax.lax.conv_general_dilated(
        y, params["rgb_w"], (1, 1), ((0, 0), (0, 0)),
        dimension_numbers=("NCHW", "OIHW", "NCHW"))
    return (r + params["rgb_b"].reshape(1, out_channels, 1, 1)) * scales["rgb_scale"]


if __name__ == "__main__":
    B = 2
    LATENT = 32
    NUM_CLASSES = 8
    INIT_CHANNELS = 16
    OUT_CHANNELS = 3

    key = jax.random.PRNGKey(0)
    kx, kl, kp = jax.random.split(key, 3)

    x = jax.random.normal(kx, (B, LATENT), jnp.float32)
    labels = (jax.random.uniform(kl, (B, NUM_CLASSES)) > 0.5).astype(jnp.float32)

    params, scales = init_generator_params(kp, LATENT, OUT_CHANNELS,
                                           INIT_CHANNELS, NUM_CLASSES)
    prep = prepare_generator_params(params, scales, LATENT, OUT_CHANNELS,
                                    INIT_CHANNELS)

    fwd = jax.jit(functools.partial(generator_forward,
                                    latent_dim=LATENT,
                                    out_channels=OUT_CHANNELS,
                                    init_channels=INIT_CHANNELS))
    out = jax.block_until_ready(fwd(prep, x, labels))

    assert out.shape == (B, OUT_CHANNELS, 4, 4), out.shape
    assert out.dtype == jnp.float32
    assert bool(jnp.all(jnp.isfinite(out)))

    ref = _reference_forward(params, scales, x, labels, INIT_CHANNELS, OUT_CHANNELS)
    assert bool(jnp.allclose(out, ref, atol=3e-2, rtol=3e-2)), (
        float(jnp.max(jnp.abs(out - ref))))

    print("KERNEL_OK")
</pallas_src>

<mosaic_0001>
module attributes {stable_mosaic.version = 11 : i64} {
  func.func @_generator_kernel(%arg0: memref<2x40xf32, #tpu.memory_space<vmem>>, %arg1: memref<40x256xf32, #tpu.memory_space<vmem>>, %arg2: memref<1x256xf32, #tpu.memory_space<vmem>>, %arg3: memref<256x256xf32, #tpu.memory_space<vmem>>, %arg4: memref<256x256xf32, #tpu.memory_space<vmem>>, %arg5: memref<1x256xf32, #tpu.memory_space<vmem>>, %arg6: memref<256x128xf32, #tpu.memory_space<vmem>>, %arg7: memref<1x128xf32, #tpu.memory_space<vmem>>, %arg8: memref<2x128xf32, #tpu.memory_space<vmem>>) attributes {dimension_semantics = [], scalar_prefetch = 0 : i64, scratch_operands = 0 : i64, tpu.core_type = #tpu.core_type<tc>} {
    %c0 = arith.constant 0 : index
    %c0_0 = arith.constant 0 : index
    %0 = vector.load %arg0[%c0, %c0_0] : memref<2x40xf32, #tpu.memory_space<vmem>>, vector<2x40xf32>
    %1 = tpu.iota {dimensions = array<i32: 1>} : vector<2x40xi32>
    %c32_i32 = arith.constant 32 : i32
    %2 = vector.broadcast %c32_i32 : i32 to vector<2x40xi32>
    %3 = arith.cmpi slt, %1, %2 : vector<2x40xi32>
    %4 = arith.mulf %0, %0 : vector<2x40xf32>
    %cst = arith.constant 0.000000e+00 : f32
    %5 = vector.broadcast %cst : f32 to vector<2x40xf32>
    %6 = arith.select %3, %4, %5 : vector<2x40xi1>, vector<2x40xf32>
    %cst_1 = arith.constant dense<0.000000e+00> : vector<2xf32>
    %7 = vector.multi_reduction <add>, %6, %cst_1 [1] : vector<2x40xf32> to vector<2xf32>
    %8 = vector.shape_cast %7 : vector<2xf32> to vector<2x1xf32>
    %cst_2 = arith.constant 3.125000e-02 : f32
    %9 = vector.broadcast %cst_2 : f32 to vector<2x1xf32>
    %10 = arith.mulf %8, %9 : vector<2x1xf32>
    %cst_3 = arith.constant 9.99999993E-9 : f32
    %11 = vector.broadcast %cst_3 : f32 to vector<2x1xf32>
    %12 = arith.addf %10, %11 : vector<2x1xf32>
    %13 = math.rsqrt %12 : vector<2x1xf32>
    %14 = vector.broadcast %13 : vector<2x1xf32> to vector<2x40xf32>
    %15 = arith.mulf %0, %14 : vector<2x40xf32>
    %16 = arith.select %3, %15, %0 : vector<2x40xi1>, vector<2x40xf32>
    %c0_4 = arith.constant 0 : index
    %c0_5 = arith.constant 0 : index
    %17 = vector.load %arg1[%c0_4, %c0_5] : memref<40x256xf32, #tpu.memory_space<vmem>>, vector<40x256xf32>
    %cst_6 = arith.constant dense<0.000000e+00> : vector<2x256xf32>
    %18 = tpu.matmul %16, %17, %cst_6 {dimension_numbers = #tpu.dot_dimension_numbers<[1], [0], [0], [1], [0, 0, 1, 1], [], []>} : vector<2x40xf32>, vector<40x256xf32>, vector<2x256xf32> -> vector<2x256xf32>
    %c0_7 = arith.constant 0 : index
    %c0_8 = arith.constant 0 : index
    %19 = vector.load %arg2[%c0_7, %c0_8] : memref<1x256xf32, #tpu.memory_space<vmem>>, vector<1x256xf32>
    %20 = vector.broadcast %19 : vector<1x256xf32> to vector<2x256xf32>
    %21 = arith.addf %18, %20 : vector<2x256xf32>
    %cst_9 = arith.constant 2.000000e-01 : f32
    %22 = vector.broadcast %cst_9 : f32 to vector<2x256xf32>
    %23 = arith.mulf %22, %21 : vector<2x256xf32>
    %24 = arith.maximumf %21, %23 : vector<2x256xf32>
    %c0_10 = arith.constant 0 : index
    %c0_11 = arith.constant 0 : index
    %25 = vector.load %arg3[%c0_10, %c0_11] : memref<256x256xf32, #tpu.memory_space<vmem>>, vector<256x256xf32>
    %26 = arith.mulf %24, %24 : vector<2x256xf32>
    %cst_12 = arith.constant dense<0.000000e+00> : vector<2x256xf32>
    %27 = tpu.matmul %26, %25, %cst_12 {dimension_numbers = #tpu.dot_dimension_numbers<[1], [0], [0], [1], [0, 0, 1, 1], [], []>} : vector<2x256xf32>, vector<256x256xf32>, vector<2x256xf32> -> vector<2x256xf32>
    %cst_13 = arith.constant 9.99999993E-9 : f32
    %28 = vector.broadcast %cst_13 : f32 to vector<2x256xf32>
    %29 = arith.addf %27, %28 : vector<2x256xf32>
    %30 = math.rsqrt %29 : vector<2x256xf32>
    %31 = arith.mulf %24, %30 : vector<2x256xf32>
    %c0_14 = arith.constant 0 : index
    %c0_15 = arith.constant 0 : index
    %32 = vector.load %arg4[%c0_14, %c0_15] : memref<256x256xf32, #tpu.memory_space<vmem>>, vector<256x256xf32>
    %cst_16 = arith.constant dense<0.000000e+00> : vector<2x256xf32>
    %33 = tpu.matmul %31, %32, %cst_16 {dimension_numbers = #tpu.dot_dimension_numbers<[1], [0], [0], [1], [0, 0, 1, 1], [], []>} : vector<2x256xf32>, vector<256x256xf32>, vector<2x256xf32> -> vector<2x256xf32>
    %c0_17 = arith.constant 0 : index
    %c0_18 = arith.constant 0 : index
    %34 = vector.load %arg5[%c0_17, %c0_18] : memref<1x256xf32, #tpu.memory_space<vmem>>, vector<1x256xf32>
    %35 = vector.broadcast %34 : vector<1x256xf32> to vector<2x256xf32>
    %36 = arith.addf %33, %35 : vector<2x256xf32>
    %cst_19 = arith.constant 2.000000e-01 : f32
    %37 = vector.broadcast %cst_19 : f32 to vector<2x256xf32>
    %38 = arith.mulf %37, %36 : vector<2x256xf32>
    %39 = arith.maximumf %36, %38 : vector<2x256xf32>
    %c0_20 = arith.constant 0 : index
    %c0_21 = arith.constant 0 : index
    %40 = vector.load %arg3[%c0_20, %c0_21] : memref<256x256xf32, #tpu.memory_space<vmem>>, vector<256x256xf32>
    %41 = arith.mulf %39, %39 : vector<2x256xf32>
    %cst_22 = arith.constant dense<0.000000e+00> : vector<2x256xf32>
    %42 = tpu.matmul %41, %40, %cst_22 {dimension_numbers = #tpu.dot_dimension_numbers<[1], [0], [0], [1], [0, 0, 1, 1], [], []>} : vector<2x256xf32>, vector<256x256xf32>, vector<2x256xf32> -> vector<2x256xf32>
    %cst_23 = arith.constant 9.99999993E-9 : f32
    %43 = vector.broadcast %cst_23 : f32 to vector<2x256xf32>
    %44 = arith.addf %42, %43 : vector<2x256xf32>
    %45 = math.rsqrt %44 : vector<2x256xf32>
    %46 = arith.mulf %39, %45 : vector<2x256xf32>
    %c0_24 = arith.constant 0 : index
    %c0_25 = arith.constant 0 : index
    %47 = vector.load %arg6[%c0_24, %c0_25] : memref<256x128xf32, #tpu.memory_space<vmem>>, vector<256x128xf32>
    %cst_26 = arith.constant dense<0.000000e+00> : vector<2x128xf32>
    %48 = tpu.matmul %46, %47, %cst_26 {dimension_numbers = #tpu.dot_dimension_numbers<[1], [0], [0], [1], [0, 0, 1, 1], [], []>} : vector<2x256xf32>, vector<256x128xf32>, vector<2x128xf32> -> vector<2x128xf32>
    %c0_27 = arith.constant 0 : index
    %c0_28 = arith.constant 0 : index
    %49 = vector.load %arg7[%c0_27, %c0_28] : memref<1x128xf32, #tpu.memory_space<vmem>>, vector<1x128xf32>
    %50 = vector.broadcast %49 : vector<1x128xf32> to vector<2x128xf32>
    %51 = arith.addf %48, %50 : vector<2x128xf32>
    %c0_29 = arith.constant 0 : index
    %c0_30 = arith.constant 0 : index
    %52 = vector.load %arg8[%c0_29, %c0_30] : memref<2x128xf32, #tpu.memory_space<vmem>>, vector<2x128xf32>
    tpu.vector_store %arg8[%c0_29, %c0_30], %51 {strides = array<i32>} : memref<2x128xf32, #tpu.memory_space<vmem>>, vector<2x128xf32>,
    return
  }
}

</mosaic_0001>

<llo_original>
// kernel: generator_forward.1
$region0: #{generator_forward.1}
  #allocation0 [shape = 'u32[]', space=smem, size = 0x4, offset = 0x4, fixed_abs, tag = 'smem constant byte address 0x4 - core index']
  #allocation1 [shape = 'u32[144,128]{1,0:T(1,128)}', space=vmem, size = 0x12000, scoped, tag = 'internal scratch']
  %s0 = inlined_call_operand.vmem [shape: f32[2,40], index: 0, kind: input, shape index: {}]
  %s1 = inlined_call_operand.hbm [shape: f32[40,256], index: 1, kind: input, shape index: {}]
  %s2 = inlined_call_operand.vmem [shape: f32[1,256], index: 2, kind: input, shape index: {}]
  %s3 = inlined_call_operand.hbm [shape: f32[256,256], index: 3, kind: input, shape index: {}]
  %s4 = inlined_call_operand.hbm [shape: f32[256,256], index: 4, kind: input, shape index: {}]
  %s5 = inlined_call_operand.vmem [shape: f32[1,256], index: 5, kind: input, shape index: {}]
  %s6 = inlined_call_operand.hbm [shape: f32[256,128], index: 6, kind: input, shape index: {}]
  %s7 = inlined_call_operand.vmem [shape: f32[1,128], index: 7, kind: input, shape index: {}]
  %s8 = inlined_call_operand.vmem [shape: f32[2,128], index: 8, kind: output, shape index: {}]
  %s9 = sld [smem:[#allocation0]]
  $region58: #{generator_forward.1} parent=0
    _
  %s11 = ssub.s32 1, %s9
  %s12 = scalar_select 0, %s11, %s9
  $region1: #{generator_forward.1} parent=0
    #allocation2 [shape = 'u8[40960]{0}', space=vmem, size = 0xa000, scoped, tag = 'input window, operand 1, single buffered']
    #allocation3 [shape = 's32[1]{0}', space=sflag, size = 0x4, scoped, tag = 'scoped memory for generator_forward.1']
    #allocation4 [shape = 'u8[262144]{0}', space=vmem, size = 0x40000, scoped, tag = 'input window, operand 3, single buffered']
    #allocation5 [shape = 's32[1]{0}', space=sflag, size = 0x4, scoped, tag = 'scoped memory for generator_forward.1']
    #allocation6 [shape = 'u8[262144]{0}', space=vmem, size = 0x40000, scoped, tag = 'input window, operand 4, single buffered']
    #allocation7 [shape = 'u8[131072]{0}', space=vmem, size = 0x20000, scoped, tag = 'input window, operand 6, single buffered']
    #allocation8 [shape = 's32[1]{0}', space=sflag, size = 0x4, scoped, tag = 'scoped memory for generator_forward.1']
    %13 = vsyncpa [#allocation3], 0
    %14 = vsyncpa [#allocation5], 0
    %15 = vsyncpa [#allocation8], 0
    // Predicated region
    $region2: #{generator_forward.1} parent=1 // pred_check
      _
    $region3: #{generator_forward.1} parent=1 // pred_check_branch
      %17 = sbr.rel (0) target = $region5
    $region4: #{generator_forward.1} parent=1 // pred_region
      _
    $region5: #{generator_forward.1} parent=1 // pred_fallthru
      _
    // Predicated region
    $region6: #{generator_forward.1} parent=1 // pred_check
      _
    $region7: #{generator_forward.1} parent=1 // pred_check_branch
      %19 = sbr.rel (0) target = $region9
    $region8: #{generator_forward.1} parent=1 // pred_region
      %s21 = ssub.s32 1280, 1280
      %22 = vsyncadd [#allocation3], %s21
      %s23 = sshll.u32 [#allocation2], 4
      %s24 = int_to_ptr.vmem [resolvable:$true] %s23
      %29 = dma.hbm_to_vmem [thread:$0]  %s1, 1280, %s24, [#allocation3], 256, 256, 16
    $region9: #{generator_forward.1} parent=1 // pred_fallthru
      _
    // Predicated region
    $region10: #{generator_forward.1} parent=1 // pred_check
      _
    $region11: #{generator_forward.1} parent=1 // pred_check_branch
      %31 = sbr.rel (0) target = $region13
    $region12: #{generator_forward.1} parent=1 // pred_region
      _
    $region13: #{generator_forward.1} parent=1 // pred_fallthru
      _
    // Predicated region
    $region14: #{generator_forward.1} parent=1 // pred_check
      _
    $region15: #{generator_forward.1} parent=1 // pred_check_branch
      %33 = sbr.rel (0) target = $region17
    $region16: #{generator_forward.1} parent=1 // pred_region
      %s35 = ssub.s32 8192, 8192
      %36 = vsyncadd [#allocation5], %s35
      %s37 = sshll.u32 [#allocation4], 4
      %s38 = int_to_ptr.vmem [resolvable:$true] %s37
      %43 = dma.hbm_to_vmem [thread:$0]  %s3, 8192, %s38, [#allocation5], 256, 256, 16
    $region17: #{generator_forward.1} parent=1 // pred_fallthru
      _
    // Predicated region
    $region18: #{generator_forward.1} parent=1 // pred_check
      _
    $region19: #{generator_forward.1} parent=1 // pred_check_branch
      %45 = sbr.rel (0) target = $region21
    $region20: #{generator_forward.1} parent=1 // pred_region
      %s47 = ssub.s32 8192, 8192
      %48 = vsyncadd [#allocation5], %s47
      %s49 = sshll.u32 [#allocation6], 4
      %s50 = int_to_ptr.vmem [resolvable:$true] %s49
      %55 = dma.hbm_to_vmem [thread:$0]  %s4, 8192, %s50, [#allocation5], 256, 256, 16
    $region21: #{generator_forward.1} parent=1 // pred_fallthru
      _
    // Predicated region
    $region22: #{generator_forward.1} parent=1 // pred_check
      _
    $region23: #{generator_forward.1} parent=1 // pred_check_branch
      %57 = sbr.rel (0) target = $region25
    $region24: #{generator_forward.1} parent=1 // pred_region
      _
    $region25: #{generator_forward.1} parent=1 // pred_fallthru
      _
    // Predicated region
    $region26: #{generator_forward.1} parent=1 // pred_check
      _
    $region27: #{generator_forward.1} parent=1 // pred_check_branch
      %59 = sbr.rel (0) target = $region29
    $region28: #{generator_forward.1} parent=1 // pred_region
      %s61 = ssub.s32 4096, 4096
      %62 = vsyncadd [#allocation8], %s61
      %s63 = sshll.u32 [#allocation7], 4
      %s64 = int_to_ptr.vmem [resolvable:$true] %s63
      %69 = dma.hbm_to_vmem [thread:$0]  %s6, 4096, %s64, [#allocation8], 128, 128, 8
    $region29: #{generator_forward.1} parent=1 // pred_fallthru
      _
    // Predicated region
    $region30: #{generator_forward.1} parent=1 // pred_check
      _
    $region31: #{generator_forward.1} parent=1 // pred_check_branch
      %71 = sbr.rel (0) target = $region33
    $region32: #{generator_forward.1} parent=1 // pred_region
      _
    $region33: #{generator_forward.1} parent=1 // pred_fallthru
      _
    // Predicated region
    $region34: #{generator_forward.1} parent=1 // pred_check
      _
    $region35: #{generator_forward.1} parent=1 // pred_check_branch
      %73 = sbr.rel (0) target = $region37
    $region36: #{generator_forward.1} parent=1 // pred_region
      %74 = dma.done [#allocation3], 1280
    $region37: #{generator_forward.1} parent=1 // pred_fallthru
      _
    // Predicated region
    $region38: #{generator_forward.1} parent=1 // pred_check
      _
    $region39: #{generator_forward.1} parent=1 // pred_check_branch
      %76 = sbr.rel (0) target = $region41
    $region40: #{generator_forward.1} parent=1 // pred_region
      %77 = dma.done [#allocation5], 8192
    $region41: #{generator_forward.1} parent=1 // pred_fallthru
      _
    // Predicated region
    $region42: #{generator_forward.1} parent=1 // pred_check
      _
    $region43: #{generator_forward.1} parent=1 // pred_check_branch
      %79 = sbr.rel (0) target = $region45
    $region44: #{generator_forward.1} parent=1 // pred_region
      %80 = dma.done [#allocation5], 8192
    $region45: #{generator_forward.1} parent=1 // pred_fallthru
      _
    // Predicated region
    $region46: #{generator_forward.1} parent=1 // pred_check
      _
    $region47: #{generator_forward.1} parent=1 // pred_check_branch
      %82 = sbr.rel (0) target = $region49
    $region48: #{generator_forward.1} parent=1 // pred_region
      %83 = dma.done [#allocation8], 4096
    $region49: #{generator_forward.1} parent=1 // pred_fallthru
      _
    %v84 = vld [vmem:[%s0] sm:$0x3]
    %v85 = vlaneseq
    %v86 = vand.u32 %v85, 127
    %vm87 = vcmp.lt.s32.totalorder %v86, 32
    %v88 = vmul.f32 %v84, %v84
    %v89 = vsel %vm87, %v88, 0.0
    %vm90 = vcmask 320512
    %v91 = vsel %vm90, %v89, 0.0
    %92 = vadd.xlane.f32.xlu0 %v91
    %v93 = vpop.xlane.xlu0 %92
    %v94 = vmul.f32 %v93, 0.03125
    %v95 = vadd.f32 %v94, 1e-08
    %v96 = vrsqrt.pop %v95
    %v97 = vmul.f32 %v84, %v96
    %v98 = vsel %vm87, %v97, %v84
    %v99 = vld [vmem:[#allocation2] sm:$0xff]
    %v100 = vld [vmem:[#allocation2 + $0x8] sm:$0xff]
    %v101 = vld [vmem:[#allocation2 + $0x10] sm:$0xff]
    %v102 = vld [vmem:[#allocation2 + $0x18] sm:$0xff]
    %v103 = vld [vmem:[#allocation2 + $0x20] sm:$0xff]
    %v104 = vld [vmem:[#allocation2 + $0x28] sm:$0xff]
    %v105 = vld [vmem:[#allocation2 + $0x30] sm:$0xff]
    %v106 = vld [vmem:[#allocation2 + $0x38] sm:$0xff]
    %v107 = vld [vmem:[#allocation2 + $0x40] sm:$0xff]
    %v108 = vld [vmem:[#allocation2 + $0x48] sm:$0xff]
    %v109 = vld [vmem:[%s2] sm:$0x3]
    %v111 = vlaneseq
    %v112 = vshrl.u32 %v111, 7
    %v113 = vsub.s32 0, %v112
    %v114 = vrot.slane %v109, %v113
    %v115 = vlaneseq
    %v116 = vshrl.u32 %v115, 7
    %v117 = vsub.s32 1, %v116
    %v118 = vrot.slane %v109, %v117
    %vm121 = vcmask 326656
    %v123 = vsel %vm121, %v98, 0
    %125 = vmatprep.subr.mxu0 %v100
    %126 = vmatpush1.msra.mxu0 %v99
    %127 = vmatprep.subr.mxu0 %v102
    %128 = vmatpush1.msra.mxu0 %v101
    %129 = vmatprep.subr.mxu0 %v104
    %130 = vmatpush1.msra.mxu0 %v103
    %131 = vmatprep.subr.mxu0 %v106
    %132 = vmatpush1.msra.mxu0 %v105
    %133 = vmatprep.subr.mxu0 %v108
    %134 = vmatpush1.msra.mxu0 %v107
    %135 = vmatprep.subr.mxu0 0.0
    %136 = vmatpush1.msra.mxu0 0.0
    %137 = vmatprep.subr.mxu0 0.0
    %138 = vmatpush1.msra.mxu0 0.0
    %139 = vmatprep.subr.mxu0 0.0
    %140 = vmatpush1.msra.mxu0 0.0
    %141 = vmatprep.subr.mxu0 0.0
    %142 = vmatpush1.msra.mxu0 0.0
    %143 = vmatprep.subr.mxu0 0.0
    %144 = vmatpush1.msra.mxu0 0.0
    %145 = vmatprep.subr.mxu0 0.0
    %146 = vmatpush1.msra.mxu0 0.0
    %147 = vmatprep.subr.mxu0 0.0
    %148 = vmatpush1.msra.mxu0 0.0
    %149 = vmatprep.subr.mxu0 0.0
    %150 = vmatpush1.msra.mxu0 0.0
    %151 = vmatprep.subr.mxu0 0.0
    %152 = vmatpush1.msra.mxu0 0.0
    %153 = vmatprep.subr.mxu0 0.0
    %154 = vmatpush1.msra.mxu0 0.0
    %155 = vmatprep.subr.mxu0 0.0
    %156 = vmatpush1.msra.mxu0 0.0
    %157 = vmatprep.subr.mxu0 0.0
    %158 = vmatpush1.msra.mxu0 0.0
    %159 = vmatprep.subr.mxu0 0.0
    %160 = vmatpush1.msra.mxu0 0.0
    %161 = vmatprep.subr.mxu0 0.0
    %162 = vmatpush1.msra.mxu0 0.0
    %163 = vmatprep.subr.mxu0 0.0
    %164 = vmatpush1.msra.mxu0 0.0
    %165 = vmatprep.subr.mxu0 0.0
    %166 = vmatpush1.msra.mxu0 0.0
    %167 = vmatprep.subr.mxu0 0.0
    %168 = vmatpush1.msra.mxu0 0.0
    %169 = vmatprep.subr.mxu0 0.0
    %170 = vmatpush1.msra.mxu0 0.0
    %171 = vmatprep.subr.mxu0 0.0
    %172 = vmatpush1.msra.mxu0 0.0
    %173 = vmatprep.subr.mxu0 0.0
    %174 = vmatpush1.msra.mxu0 0.0
    %175 = vmatprep.subr.mxu0 0.0
    %176 = vmatpush1.msra.mxu0 0.0
    %177 = vmatprep.subr.mxu0 0.0
    %178 = vmatpush1.msra.mxu0 0.0
    %179 = vmatprep.subr.mxu0 0.0
    %180 = vmatpush1.msra.mxu0 0.0
    %181 = vmatprep.subr.mxu0 0.0
    %182 = vmatpush1.msra.mxu0 0.0
    %183 = vmatprep.subr.mxu0 0.0
    %184 = vmatpush1.msra.mxu0 0.0
    %185 = vmatprep.subr.mxu0 0.0
    %186 = vmatpush1.msra.mxu0 0.0
    %187 = vmatprep.subr.mxu0 0.0
    %188 = vmatpush1.msra.mxu0 0.0
    %189 = vmatprep.mubr.f32.mxu0 0.0
    %190 = vmatmul.mubr.f32.gmra.mrb[0].mxu0 %v123
    %v191 = vpop.f32.mrb[0].mxu0
    %v192 = vadd.f32 %v114, %v191
    %v193 = vpop.f32.mrb[0].mxu0
    %v194 = vadd.f32 %v118, %v193
    %195 = vdwg.mxu0
    %v196 = vmul.f32 %v192, 0.2
    %v197 = vmul.f32 %v194, 0.2
    %v198 = vmax.f32 %v192, %v196
    %v199 = vmax.f32 %v194, %v197
    %v200 = vld [vmem:[#allocation4] sm:$0xff]
    %v201 = vld [vmem:[#allocation4 + $0x8] sm:$0xff]
    %v202 = vld [vmem:[#allocation4 + $0x10] sm:$0xff]
    %v203 = vld [vmem:[#allocation4 + $0x18] sm:$0xff]
    %v204 = vld [vmem:[#allocation4 + $0x20] sm:$0xff]
    %v205 = vld [vmem:[#allocation4 + $0x28] sm:$0xff]
    %v206 = vld [vmem:[#allocation4 + $0x30] sm:$0xff]
    %v207 = vld [vmem:[#allocation4 + $0x38] sm:$0xff]
    %v208 = vld [vmem:[#allocation4 + $0x40] sm:$0xff]
    %v209 = vld [vmem:[#allocation4 + $0x48] sm:$0xff]
    %v210 = vld [vmem:[#allocation4 + $0x50] sm:$0xff]
    %v211 = vld [vmem:[#allocation4 + $0x58] sm:$0xff]
    %v212 = vld [vmem:[#allocation4 + $0x60] sm:$0xff]
    %v213 = vld [vmem:[#allocation4 + $0x68] sm:$0xff]
    %v214 = vld [vmem:[#allocation4 + $0x70] sm:$0xff]
    %v215 = vld [vmem:[#allocation4 + $0x78] sm:$0xff]
    %v216 = vld [vmem:[#allocation4 + $0x80] sm:$0xff]
    %v217 = vld [vmem:[#allocation4 + $0x88] sm:$0xff]
    %v218 = vld [vmem:[#allocation4 + $0x90] sm:$0xff]
    %v219 = vld [vmem:[#allocation4 + $0x98] sm:$0xff]
    %v220 = vld [vmem:[#allocation4 + $0xa0] sm:$0xff]
    %v221 = vld [vmem:[#allocation4 + $0xa8] sm:$0xff]
    %v222 = vld [vmem:[#allocation4 + $0xb0] sm:$0xff]
    %v223 = vld [vmem:[#allocation4 + $0xb8] sm:$0xff]
    %v224 = vld [vmem:[#allocation4 + $0xc0] sm:$0xff]
    %v225 = vld [vmem:[#allocation4 + $0xc8] sm:$0xff]
    %v226 = vld [vmem:[#allocation4 + $0xd0] sm:$0xff]
    %v227 = vld [vmem:[#allocation4 + $0xd8] sm:$0xff]
    %v228 = vld [vmem:[#allocation4 + $0xe0] sm:$0xff]
    %v229 = vld [vmem:[#allocation4 + $0xe8] sm:$0xff]
    %v230 = vld [vmem:[#allocation4 + $0xf0] sm:$0xff]
    %v231 = vld [vmem:[#allocation4 + $0xf8] sm:$0xff]
    %v232 = vld [vmem:[#allocation4 + $0x100] sm:$0xff]
    %v233 = vld [vmem:[#allocation4 + $0x108] sm:$0xff]
    %v234 = vld [vmem:[#allocation4 + $0x110] sm:$0xff]
    %v235 = vld [vmem:[#allocation4 + $0x118] sm:$0xff]
    %v236 = vld [vmem:[#allocation4 + $0x120] sm:$0xff]
    %v237 = vld [vmem:[#allocation4 + $0x128] sm:$0xff]
    %v238 = vld [vmem:[#allocation4 + $0x130] sm:$0xff]
    %v239 = vld [vmem:[#allocation4 + $0x138] sm:$0xff]
    %v240 = vld [vmem:[#allocation4 + $0x140] sm:$0xff]
    %v241 = vld [vmem:[#allocation4 + $0x148] sm:$0xff]
    %v242 = vld [vmem:[#allocation4 + $0x150] sm:$0xff]
    %v243 = vld [vmem:[#allocation4 + $0x158] sm:$0xff]
    %v244 = vld [vmem:[#allocation4 + $0x160] sm:$0xff]
    %v245 = vld [vmem:[#allocation4 + $0x168] sm:$0xff]
    %v246 = vld [vmem:[#allocation4 + $0x170] sm:$0xff]
    %v247 = vld [vmem:[#allocation4 + $0x178] sm:$0xff]
    %v248 = vld [vmem:[#allocation4 + $0x180] sm:$0xff]
    %v249 = vld [vmem:[#allocation4 + $0x188] sm:$0xff]
    %v250 = vld [vmem:[#allocation4 + $0x190] sm:$0xff]
    %v251 = vld [vmem:[#allocation4 + $0x198] sm:$0xff]
    %v252 = vld [vmem:[#allocation4 + $0x1a0] sm:$0xff]
    %v253 = vld [vmem:[#allocation4 + $0x1a8] sm:$0xff]
    %v254 = vld [vmem:[#allocation4 + $0x1b0] sm:$0xff]
    %v255 = vld [vmem:[#allocation4 + $0x1b8] sm:$0xff]
    %v256 = vld [vmem:[#allocation4 + $0x1c0] sm:$0xff]
    %v257 = vld [vmem:[#allocation4 + $0x1c8] sm:$0xff]
    %v258 = vld [vmem:[#allocation4 + $0x1d0] sm:$0xff]
    %v259 = vld [vmem:[#allocation4 + $0x1d8] sm:$0xff]
    %v260 = vld [vmem:[#allocation4 + $0x1e0] sm:$0xff]
    %v261 = vld [vmem:[#allocation4 + $0x1e8] sm:$0xff]
    %v262 = vld [vmem:[#allocation4 + $0x1f0] sm:$0xff]
    %v263 = vld [vmem:[#allocation4 + $0x1f8] sm:$0xff]
    %v264 = vmul.f32 %v198, %v198
    %v265 = vmul.f32 %v199, %v199
    %266 = vmatprep.subr.mxu0 %v201
    %267 = vmatpush1.msra.mxu0 %v200
    %268 = vmatprep.subr.mxu0 %v203
    %269 = vmatpush1.msra.mxu0 %v202
    %270 = vmatprep.subr.mxu0 %v205
    %271 = vmatpush1.msra.mxu0 %v204
    %272 = vmatprep.subr.mxu0 %v207
    %273 = vmatpush1.msra.mxu0 %v206
    %274 = vmatprep.subr.mxu0 %v209
    %275 = vmatpush1.msra.mxu0 %v208
    %276 = vmatprep.subr.mxu0 %v211
    %277 = vmatpush1.msra.mxu0 %v210
    %278 = vmatprep.subr.mxu0 %v213
    %279 = vmatpush1.msra.mxu0 %v212
    %280 = vmatprep.subr.mxu0 %v215
    %281 = vmatpush1.msra.mxu0 %v214
    %282 = vmatprep.subr.mxu0 %v217
    %283 = vmatpush1.msra.mxu0 %v216
    %284 = vmatprep.subr.mxu0 %v219
    %285 = vmatpush1.msra.mxu0 %v218
    %286 = vmatprep.subr.mxu0 %v221
    %287 = vmatpush1.msra.mxu0 %v220
    %288 = vmatprep.subr.mxu0 %v223
    %289 = vmatpush1.msra.mxu0 %v222
    %290 = vmatprep.subr.mxu0 %v225
    %291 = vmatpush1.msra.mxu0 %v224
    %292 = vmatprep.subr.mxu0 %v227
    %293 = vmatpush1.msra.mxu0 %v226
    %294 = vmatprep.subr.mxu0 %v229
    %295 = vmatpush1.msra.mxu0 %v228
    %296 = vmatprep.subr.mxu0 %v231
    %297 = vmatpush1.msra.mxu0 %v230
    %298 = vmatprep.subr.mxu0 %v233
    %299 = vmatpush1.msra.mxu0 %v232
    %300 = vmatprep.subr.mxu0 %v235
    %301 = vmatpush1.msra.mxu0 %v234
    %302 = vmatprep.subr.mxu0 %v237
    %303 = vmatpush1.msra.mxu0 %v236
    %304 = vmatprep.subr.mxu0 %v239
    %305 = vmatpush1.msra.mxu0 %v238
    %306 = vmatprep.subr.mxu0 %v241
    %307 = vmatpush1.msra.mxu0 %v240
    %308 = vmatprep.subr.mxu0 %v243
    %309 = vmatpush1.msra.mxu0 %v242
    %310 = vmatprep.subr.mxu0 %v245
    %311 = vmatpush1.msra.mxu0 %v244
    %312 = vmatprep.subr.mxu0 %v247
    %313 = vmatpush1.msra.mxu0 %v246
    %314 = vmatprep.subr.mxu0 %v249
    %315 = vmatpush1.msra.mxu0 %v248
    %316 = vmatprep.subr.mxu0 %v251
    %317 = vmatpush1.msra.mxu0 %v250
    %318 = vmatprep.subr.mxu0 %v253
    %319 = vmatpush1.msra.mxu0 %v252
    %320 = vmatprep.subr.mxu0 %v255
    %321 = vmatpush1.msra.mxu0 %v254
    %322 = vmatprep.subr.mxu0 %v257
    %323 = vmatpush1.msra.mxu0 %v256
    %324 = vmatprep.subr.mxu0 %v259
    %325 = vmatpush1.msra.mxu0 %v258
    %326 = vmatprep.subr.mxu0 %v261
    %327 = vmatpush1.msra.mxu0 %v260
    %328 = vmatprep.subr.mxu0 %v263
    %329 = vmatpush1.msra.mxu0 %v262
    %330 = vmatprep.mubr.f32.mxu0 %v265
    %331 = vmatmul.mubr.f32.gmra.mrb[0].mxu0 %v264
    %v332 = vpop.f32.mrb[0].mxu0
    %v333 = vadd.f32 1e-08, %v332
    %v334 = vpop.f32.mrb[0].mxu0
    %v335 = vadd.f32 1e-08, %v334
    %336 = vdwg.mxu0
    %v337 = vrsqrt.pop %v333
    %v338 = vrsqrt.pop %v335
    %v339 = vmul.f32 %v198, %v337
    %v340 = vmul.f32 %v199, %v338
    %v341 = vld [vmem:[#allocation6] sm:$0xff]
    %v342 = vld [vmem:[#allocation6 + $0x8] sm:$0xff]
    %v343 = vld [vmem:[#allocation6 + $0x10] sm:$0xff]
    %v344 = vld [vmem:[#allocation6 + $0x18] sm:$0xff]
    %v345 = vld [vmem:[#allocation6 + $0x20] sm:$0xff]
    %v346 = vld [vmem:[#allocation6 + $0x28] sm:$0xff]
    %v347 = vld [vmem:[#allocation6 + $0x30] sm:$0xff]
    %v348 = vld [vmem:[#allocation6 + $0x38] sm:$0xff]
    %v349 = vld [vmem:[#allocation6 + $0x40] sm:$0xff]
    %v350 = vld [vmem:[#allocation6 + $0x48] sm:$0xff]
    %v351 = vld [vmem:[#allocation6 + $0x50] sm:$0xff]
    %v352 = vld [vmem:[#allocation6 + $0x58] sm:$0xff]
    %v353 = vld [vmem:[#allocation6 + $0x60] sm:$0xff]
    %v354 = vld [vmem:[#allocation6 + $0x68] sm:$0xff]
    %v355 = vld [vmem:[#allocation6 + $0x70] sm:$0xff]
    %v356 = vld [vmem:[#allocation6 + $0x78] sm:$0xff]
    %v357 = vld [vmem:[#allocation6 + $0x80] sm:$0xff]
    %v358 = vld [vmem:[#allocation6 + $0x88] sm:$0xff]
    %v359 = vld [vmem:[#allocation6 + $0x90] sm:$0xff]
    %v360 = vld [vmem:[#allocation6 + $0x98] sm:$0xff]
    %v361 = vld [vmem:[#allocation6 + $0xa0] sm:$0xff]
    %v362 = vld [vmem:[#allocation6 + $0xa8] sm:$0xff]
    %v363 = vld [vmem:[#allocation6 + $0xb0] sm:$0xff]
    %v364 = vld [vmem:[#allocation6 + $0xb8] sm:$0xff]
    %v365 = vld [vmem:[#allocation6 + $0xc0] sm:$0xff]
    %v366 = vld [vmem:[#allocation6 + $0xc8] sm:$0xff]
    %v367 = vld [vmem:[#allocation6 + $0xd0] sm:$0xff]
    %v368 = vld [vmem:[#allocation6 + $0xd8] sm:$0xff]
    %v369 = vld [vmem:[#allocation6 + $0xe0] sm:$0xff]
    %v370 = vld [vmem:[#allocation6 + $0xe8] sm:$0xff]
    %v371 = vld [vmem:[#allocation6 + $0xf0] sm:$0xff]
    %v372 = vld [vmem:[#allocation6 + $0xf8] sm:$0xff]
    %v373 = vld [vmem:[#allocation6 + $0x100] sm:$0xff]
    %v374 = vld [vmem:[#allocation6 + $0x108] sm:$0xff]
    %v375 = vld [vmem:[#allocation6 + $0x110] sm:$0xff]
    %v376 = vld [vmem:[#allocation6 + $0x118] sm:$0xff]
    %v377 = vld [vmem:[#allocation6 + $0x120] sm:$0xff]
    %v378 = vld [vmem:[#allocation6 + $0x128] sm:$0xff]
    %v379 = vld [vmem:[#allocation6 + $0x130] sm:$0xff]
    %v380 = vld [vmem:[#allocation6 + $0x138] sm:$0xff]
    %v381 = vld [vmem:[#allocation6 + $0x140] sm:$0xff]
    %v382 = vld [vmem:[#allocation6 + $0x148] sm:$0xff]
    %v383 = vld [vmem:[#allocation6 + $0x150] sm:$0xff]
    %v384 = vld [vmem:[#allocation6 + $0x158] sm:$0xff]
    %v385 = vld [vmem:[#allocation6 + $0x160] sm:$0xff]
    %v386 = vld [vmem:[#allocation6 + $0x168] sm:$0xff]
    %v387 = vld [vmem:[#allocation6 + $0x170] sm:$0xff]
    %v388 = vld [vmem:[#allocation6 + $0x178] sm:$0xff]
    %v389 = vld [vmem:[#allocation6 + $0x180] sm:$0xff]
    %v390 = vld [vmem:[#allocation6 + $0x188] sm:$0xff]
    %v391 = vld [vmem:[#allocation6 + $0x190] sm:$0xff]
    %v392 = vld [vmem:[#allocation6 + $0x198] sm:$0xff]
    %v393 = vld [vmem:[#allocation6 + $0x1a0] sm:$0xff]
    %v394 = vld [vmem:[#allocation6 + $0x1a8] sm:$0xff]
    %v395 = vld [vmem:[#allocation6 + $0x1b0] sm:$0xff]
    %v396 = vld [vmem:[#allocation6 + $0x1b8] sm:$0xff]
    %v397 = vld [vmem:[#allocation6 + $0x1c0] sm:$0xff]
    %v398 = vld [vmem:[#allocation6 + $0x1c8] sm:$0xff]
    %v399 = vld [vmem:[#allocation6 + $0x1d0] sm:$0xff]
    %v400 = vld [vmem:[#allocation6 + $0x1d8] sm:$0xff]
    %v401 = vld [vmem:[#allocation6 + $0x1e0] sm:$0xff]
    %v402 = vld [vmem:[#allocation6 + $0x1e8] sm:$0xff]
    %v403 = vld [vmem:[#allocation6 + $0x1f0] sm:$0xff]
    %v404 = vld [vmem:[#allocation6 + $0x1f8] sm:$0xff]
    %v405 = vld [vmem:[%s5] sm:$0x3]
    %v407 = vlaneseq
    %v408 = vshrl.u32 %v407, 7
    %v409 = vsub.s32 0, %v408
    %v410 = vrot.slane %v405, %v409
    %v411 = vlaneseq
    %v412 = vshrl.u32 %v411, 7
    %v413 = vsub.s32 1, %v412
    %v414 = vrot.slane %v405, %v413
    %417 = vmatprep.subr.mxu0 %v342
    %418 = vmatpush1.msra.mxu0 %v341
    %419 = vmatprep.subr.mxu0 %v344
    %420 = vmatpush1.msra.mxu0 %v343
    %421 = vmatprep.subr.mxu0 %v346
    %422 = vmatpush1.msra.mxu0 %v345
    %423 = vmatprep.subr.mxu0 %v348
    %424 = vmatpush1.msra.mxu0 %v347
    %425 = vmatprep.subr.mxu0 %v350
    %426 = vmatpush1.msra.mxu0 %v349
    %427 = vmatprep.subr.mxu0 %v352
    %428 = vmatpush1.msra.mxu0 %v351
    %429 = vmatprep.subr.mxu0 %v354
    %430 = vmatpush1.msra.mxu0 %v353
    %431 = vmatprep.subr.mxu0 %v356
    %432 = vmatpush1.msra.mxu0 %v355
    %433 = vmatprep.subr.mxu0 %v358
    %434 = vmatpush1.msra.mxu0 %v357
    %435 = vmatprep.subr.mxu0 %v360
    %436 = vmatpush1.msra.mxu0 %v359
    %437 = vmatprep.subr.mxu0 %v362
    %438 = vmatpush1.msra.mxu0 %v361
    %439 = vmatprep.subr.mxu0 %v364
    %440 = vmatpush1.msra.mxu0 %v363
    %441 = vmatprep.subr.mxu0 %v366
    %442 = vmatpush1.msra.mxu0 %v365
    %443 = vmatprep.subr.mxu0 %v368
    %444 = vmatpush1.msra.mxu0 %v367
    %445 = vmatprep.subr.mxu0 %v370
    %446 = vmatpush1.msra.mxu0 %v369
    %447 = vmatprep.subr.mxu0 %v372
    %448 = vmatpush1.msra.mxu0 %v371
    %449 = vmatprep.subr.mxu0 %v374
    %450 = vmatpush1.msra.mxu0 %v373
    %451 = vmatprep.subr.mxu0 %v376
    %452 = vmatpush1.msra.mxu0 %v375
    %453 = vmatprep.subr.mxu0 %v378
    %454 = vmatpush1.msra.mxu0 %v377
    %455 = vmatprep.subr.mxu0 %v380
    %456 = vmatpush1.msra.mxu0 %v379
    %457 = vmatprep.subr.mxu0 %v382
    %458 = vmatpush1.msra.mxu0 %v381
    %459 = vmatprep.subr.mxu0 %v384
    %460 = vmatpush1.msra.mxu0 %v383
    %461 = vmatprep.subr.mxu0 %v386
    %462 = vmatpush1.msra.mxu0 %v385
    %463 = vmatprep.subr.mxu0 %v388
    %464 = vmatpush1.msra.mxu0 %v387
    %465 = vmatprep.subr.mxu0 %v390
    %466 = vmatpush1.msra.mxu0 %v389
    %467 = vmatprep.subr.mxu0 %v392
    %468 = vmatpush1.msra.mxu0 %v391
    %469 = vmatprep.subr.mxu0 %v394
    %470 = vmatpush1.msra.mxu0 %v393
    %471 = vmatprep.subr.mxu0 %v396
    %472 = vmatpush1.msra.mxu0 %v395
    %473 = vmatprep.subr.mxu0 %v398
    %474 = vmatpush1.msra.mxu0 %v397
    %475 = vmatprep.subr.mxu0 %v400
    %476 = vmatpush1.msra.mxu0 %v399
    %477 = vmatprep.subr.mxu0 %v402
    %478 = vmatpush1.msra.mxu0 %v401
    %479 = vmatprep.subr.mxu0 %v404
    %480 = vmatpush1.msra.mxu0 %v403
    %481 = vmatprep.mubr.f32.mxu0 %v340
    %482 = vmatmul.mubr.f32.gmra.mrb[0].mxu0 %v339
    %v483 = vpop.f32.mrb[0].mxu0
    %v484 = vadd.f32 %v410, %v483
    %v485 = vpop.f32.mrb[0].mxu0
    %v486 = vadd.f32 %v414, %v485
    %487 = vdwg.mxu0
    %v488 = vmul.f32 %v484, 0.2
    %v489 = vmul.f32 %v486, 0.2
    %v490 = vmax.f32 %v484, %v488
    %v491 = vmax.f32 %v486, %v489
    %v492 = vmul.f32 %v490, %v490
    %v493 = vmul.f32 %v491, %v491
    %494 = vmatprep.subr.mxu0 %v201
    %495 = vmatpush1.msra.mxu0 %v200
    %496 = vmatprep.subr.mxu0 %v203
    %497 = vmatpush1.msra.mxu0 %v202
    %498 = vmatprep.subr.mxu0 %v205
    %499 = vmatpush1.msra.mxu0 %v204
    %500 = vmatprep.subr.mxu0 %v207
    %501 = vmatpush1.msra.mxu0 %v206
    %502 = vmatprep.subr.mxu0 %v209
    %503 = vmatpush1.msra.mxu0 %v208
    %504 = vmatprep.subr.mxu0 %v211
    %505 = vmatpush1.msra.mxu0 %v210
    %506 = vmatprep.subr.mxu0 %v213
    %507 = vmatpush1.msra.mxu0 %v212
    %508 = vmatprep.subr.mxu0 %v215
    %509 = vmatpush1.msra.mxu0 %v214
    %510 = vmatprep.subr.mxu0 %v217
    %511 = vmatpush1.msra.mxu0 %v216
    %512 = vmatprep.subr.mxu0 %v219
    %513 = vmatpush1.msra.mxu0 %v218
    %514 = vmatprep.subr.mxu0 %v221
    %515 = vmatpush1.msra.mxu0 %v220
    %516 = vmatprep.subr.mxu0 %v223
    %517 = vmatpush1.msra.mxu0 %v222
    %518 = vmatprep.subr.mxu0 %v225
    %519 = vmatpush1.msra.mxu0 %v224
    %520 = vmatprep.subr.mxu0 %v227
    %521 = vmatpush1.msra.mxu0 %v226
    %522 = vmatprep.subr.mxu0 %v229
    %523 = vmatpush1.msra.mxu0 %v228
    %524 = vmatprep.subr.mxu0 %v231
    %525 = vmatpush1.msra.mxu0 %v230
    %526 = vmatprep.subr.mxu0 %v233
    %527 = vmatpush1.msra.mxu0 %v232
    %528 = vmatprep.subr.mxu0 %v235
    %529 = vmatpush1.msra.mxu0 %v234
    %530 = vmatprep.subr.mxu0 %v237
    %531 = vmatpush1.msra.mxu0 %v236
    %532 = vmatprep.subr.mxu0 %v239
    %533 = vmatpush1.msra.mxu0 %v238
    %534 = vmatprep.subr.mxu0 %v241
    %535 = vmatpush1.msra.mxu0 %v240
    %536 = vmatprep.subr.mxu0 %v243
    %537 = vmatpush1.msra.mxu0 %v242
    %538 = vmatprep.subr.mxu0 %v245
    %539 = vmatpush1.msra.mxu0 %v244
    %540 = vmatprep.subr.mxu0 %v247
    %541 = vmatpush1.msra.mxu0 %v246
    %542 = vmatprep.subr.mxu0 %v249
    %543 = vmatpush1.msra.mxu0 %v248
    %544 = vmatprep.subr.mxu0 %v251
    %545 = vmatpush1.msra.mxu0 %v250
    %546 = vmatprep.subr.mxu0 %v253
    %547 = vmatpush1.msra.mxu0 %v252
    %548 = vmatprep.subr.mxu0 %v255
    %549 = vmatpush1.msra.mxu0 %v254
    %550 = vmatprep.subr.mxu0 %v257
    %551 = vmatpush1.msra.mxu0 %v256
    %552 = vmatprep.subr.mxu0 %v259
    %553 = vmatpush1.msra.mxu0 %v258
    %554 = vmatprep.subr.mxu0 %v261
    %555 = vmatpush1.msra.mxu0 %v260
    %556 = vmatprep.subr.mxu0 %v263
    %557 = vmatpush1.msra.mxu0 %v262
    %558 = vmatprep.mubr.f32.mxu0 %v493
    %559 = vmatmul.mubr.f32.gmra.mrb[0].mxu0 %v492
    %v560 = vpop.f32.mrb[0].mxu0
    %v561 = vadd.f32 1e-08, %v560
    %v562 = vpop.f32.mrb[0].mxu0
    %v563 = vadd.f32 1e-08, %v562
    %564 = vdwg.mxu0
    %v565 = vrsqrt.pop %v561
    %v566 = vrsqrt.pop %v563
    %v567 = vmul.f32 %v490, %v565
    %v568 = vmul.f32 %v491, %v566
    %v569 = vld [vmem:[#allocation7] sm:$0xff]
    %v570 = vld [vmem:[#allocation7 + $0x8] sm:$0xff]
    %v571 = vld [vmem:[#allocation7 + $0x10] sm:$0xff]
    %v572 = vld [vmem:[#allocation7 + $0x18] sm:$0xff]
    %v573 = vld [vmem:[#allocation7 + $0x20] sm:$0xff]
    %v574 = vld [vmem:[#allocation7 + $0x28] sm:$0xff]
    %v575 = vld [vmem:[#allocation7 + $0x30] sm:$0xff]
    %v576 = vld [vmem:[#allocation7 + $0x38] sm:$0xff]
    %v577 = vld [vmem:[#allocation7 + $0x40] sm:$0xff]
    %v578 = vld [vmem:[#allocation7 + $0x48] sm:$0xff]
    %v579 = vld [vmem:[#allocation7 + $0x50] sm:$0xff]
    %v580 = vld [vmem:[#allocation7 + $0x58] sm:$0xff]
    %v581 = vld [vmem:[#allocation7 + $0x60] sm:$0xff]
    %v582 = vld [vmem:[#allocation7 + $0x68] sm:$0xff]
    %v583 = vld [vmem:[#allocation7 + $0x70] sm:$0xff]
    %v584 = vld [vmem:[#allocation7 + $0x78] sm:$0xff]
    %v585 = vld [vmem:[#allocation7 + $0x80] sm:$0xff]
    %v586 = vld [vmem:[#allocation7 + $0x88] sm:$0xff]
    %v587 = vld [vmem:[#allocation7 + $0x90] sm:$0xff]
    %v588 = vld [vmem:[#allocation7 + $0x98] sm:$0xff]
    %v589 = vld [vmem:[#allocation7 + $0xa0] sm:$0xff]
    %v590 = vld [vmem:[#allocation7 + $0xa8] sm:$0xff]
    %v591 = vld [vmem:[#allocation7 + $0xb0] sm:$0xff]
    %v592 = vld [vmem:[#allocation7 + $0xb8] sm:$0xff]
    %v593 = vld [vmem:[#allocation7 + $0xc0] sm:$0xff]
    %v594 = vld [vmem:[#allocation7 + $0xc8] sm:$0xff]
    %v595 = vld [vmem:[#allocation7 + $0xd0] sm:$0xff]
    %v596 = vld [vmem:[#allocation7 + $0xd8] sm:$0xff]
    %v597 = vld [vmem:[#allocation7 + $0xe0] sm:$0xff]
    %v598 = vld [vmem:[#allocation7 + $0xe8] sm:$0xff]
    %v599 = vld [vmem:[#allocation7 + $0xf0] sm:$0xff]
    %v600 = vld [vmem:[#allocation7 + $0xf8] sm:$0xff]
    %v601 = vld [vmem:[%s7] sm:$0x1]
    %v603 = vlaneseq
    %v604 = vshrl.u32 %v603, 7
    %v605 = vsub.s32 0, %v604
    %v606 = vrot.slane %v601, %v605
    %608 = vmatprep.subr.mxu0 0.0
    %609 = vmatpush1.msra.mxu0 %v569
    %610 = vmatprep.subr.mxu0 0.0
    %611 = vmatpush1.msra.mxu0 %v570
    %612 = vmatprep.subr.mxu0 0.0
    %613 = vmatpush1.msra.mxu0 %v571
    %614 = vmatprep.subr.mxu0 0.0
    %615 = vmatpush1.msra.mxu0 %v572
    %616 = vmatprep.subr.mxu0 0.0
    %617 = vmatpush1.msra.mxu0 %v573
    %618 = vmatprep.subr.mxu0 0.0
    %619 = vmatpush1.msra.mxu0 %v574
    %620 = vmatprep.subr.mxu0 0.0
    %621 = vmatpush1.msra.mxu0 %v575
    %622 = vmatprep.subr.mxu0 0.0
    %623 = vmatpush1.msra.mxu0 %v576
    %624 = vmatprep.subr.mxu0 0.0
    %625 = vmatpush1.msra.mxu0 %v577
    %626 = vmatprep.subr.mxu0 0.0
    %627 = vmatpush1.msra.mxu0 %v578
    %628 = vmatprep.subr.mxu0 0.0
    %629 = vmatpush1.msra.mxu0 %v579
    %630 = vmatprep.subr.mxu0 0.0
    %631 = vmatpush1.msra.mxu0 %v580
    %632 = vmatprep.subr.mxu0 0.0
    %633 = vmatpush1.msra.mxu0 %v581
    %634 = vmatprep.subr.mxu0 0.0
    %635 = vmatpush1.msra.mxu0 %v582
    %636 = vmatprep.subr.mxu0 0.0
    %637 = vmatpush1.msra.mxu0 %v583
    %638 = vmatprep.subr.mxu0 0.0
    %639 = vmatpush1.msra.mxu0 %v584
    %640 = vmatprep.subr.mxu0 0.0
    %641 = vmatpush1.msra.mxu0 %v585
    %642 = vmatprep.subr.mxu0 0.0
    %643 = vmatpush1.msra.mxu0 %v586
    %644 = vmatprep.subr.mxu0 0.0
    %645 = vmatpush1.msra.mxu0 %v587
    %646 = vmatprep.subr.mxu0 0.0
    %647 = vmatpush1.msra.mxu0 %v588
    %648 = vmatprep.subr.mxu0 0.0
    %649 = vmatpush1.msra.mxu0 %v589
    %650 = vmatprep.subr.mxu0 0.0
    %651 = vmatpush1.msra.mxu0 %v590
    %652 = vmatprep.subr.mxu0 0.0
    %653 = vmatpush1.msra.mxu0 %v591
    %654 = vmatprep.subr.mxu0 0.0
    %655 = vmatpush1.msra.mxu0 %v592
    %656 = vmatprep.subr.mxu0 0.0
    %657 = vmatpush1.msra.mxu0 %v593
    %658 = vmatprep.subr.mxu0 0.0
    %659 = vmatpush1.msra.mxu0 %v594
    %660 = vmatprep.subr.mxu0 0.0
    %661 = vmatpush1.msra.mxu0 %v595
    %662 = vmatprep.subr.mxu0 0.0
    %663 = vmatpush1.msra.mxu0 %v596
    %664 = vmatprep.subr.mxu0 0.0
    %665 = vmatpush1.msra.mxu0 %v597
    %666 = vmatprep.subr.mxu0 0.0
    %667 = vmatpush1.msra.mxu0 %v598
    %668 = vmatprep.subr.mxu0 0.0
    %669 = vmatpush1.msra.mxu0 %v599
    %670 = vmatprep.subr.mxu0 0.0
    %671 = vmatpush1.msra.mxu0 %v600
    %672 = vmatprep.mubr.f32.mxu0 %v568
    %673 = vmatmul.mubr.f32.gmra.mrb[0].mxu0 %v567
    %v674 = vpop.f32.mrb[0].mxu0
    %v675 = vadd.f32 %v606, %v674
    %v676 = vpop.f32.mrb[0].mxu0
    %677 = vdwg.mxu0
    %678 = vst [vmem:[%s8] sm:$0x3] %v675
    // Predicated region
    $region50: #{generator_forward.1} parent=1 // pred_check
      _
    $region51: #{generator_forward.1} parent=1 // pred_check_branch
      %680 = sbr.rel (0) target = $region53
    $region52: #{generator_forward.1} parent=1 // pred_region
      _
    $region53: #{generator_forward.1} parent=1 // pred_fallthru
      _
    // Predicated region
    $region54: #{generator_forward.1} parent=1 // pred_check
      _
    $region55: #{generator_forward.1} parent=1 // pred_check_branch
      %682 = sbr.rel (0) target = $region57
    $region56: #{generator_forward.1} parent=1 // pred_region
      _
    $region57: #{generator_forward.1} parent=1 // pred_fallthru
      _
    %683 = vsyncpa [#allocation3], 1
    %684 = vsyncpa [#allocation5], 1
    %685 = vsyncpa [#allocation8], 1

</llo_original>
